<compile_context>
chip_gen: v7x
topology: tpu7x:2x2x1
jax: 0.10.0
libtpu: 0.0.40
codegen_flags: <defaults>
</compile_context>

<pallas_src>
import jax
import jax.numpy as jnp
from jax.experimental import pallas as pl
from jax.experimental.pallas import tpu as pltpu

IN_F = 7            # nn.Linear(7, 7) input features
OUT_F = 7           # nn.Linear(7, 7) output features
OUT_PAD = 128       # out-features padded to one full lane width (lane-dense vst)
_MAX_BATCH_TILE = 512   # rows per grid step if B ever grows large


def generator_kernel(x_ref, w_ref, b_ref, o_ref):
    # x_ref: (TB, 7)        activations (batch on sublanes, features on lanes)
    # w_ref: (7, 128)       pre-transposed weight, zero-padded to 128 lanes
    # b_ref: (1, 128)       bias, zero-padded to 128 lanes
    # o_ref: (TB, 128)      lane-dense output tile (cols >= 7 are don't-care)
    z = jnp.dot(x_ref[...], w_ref[...], preferred_element_type=jnp.float32)
    z = z + b_ref[...]                       # broadcast bias over batch rows
    # lax.logistic -> EUP; keeps the VALU divide off the hot path.
    o_ref[...] = jax.nn.sigmoid(z).astype(o_ref.dtype)


def prepare_params(weight, bias):
    """One-time parameter prep (NOT per forward call).

    weight: (out=7, in=7) f32, PyTorch nn.Linear layout.
    bias:   (7,) f32.
    Returns (w_pad, b_pad) with the weight pre-transposed to (in, out) and the
    out-feature axis zero-padded to 128 so the kernel's output is lane-dense.
    """
    w_t = weight.T.astype(jnp.float32)                         # (in=7, out=7)
    w_pad = jnp.zeros((IN_F, OUT_PAD), jnp.float32).at[:, :OUT_F].set(w_t)
    b_pad = jnp.zeros((1, OUT_PAD), jnp.float32).at[:, :OUT_F].set(
        bias.astype(jnp.float32))
    return w_pad, b_pad


@jax.jit
def generator_forward(x, w_pad, b_pad):
    """x: (B, 7) f32; w_pad: (7, 128); b_pad: (1, 128). Returns (B, 7) f32."""
    B = x.shape[0]
    # Single block for small B; batch-tiled parallel grid for large B so the
    # second TensorCore on v7x picks up half the rows.
    tb = B if B <= _MAX_BATCH_TILE else _MAX_BATCH_TILE
    grid = (pl.cdiv(B, tb),)

    out_padded = pl.pallas_call(
        generator_kernel,
        out_shape=jax.ShapeDtypeStruct((B, OUT_PAD), jnp.float32),
        grid=grid,
        in_specs=[
            pl.BlockSpec((tb, IN_F), lambda i: (i, 0)),       # activations
            pl.BlockSpec((IN_F, OUT_PAD), lambda i: (0, 0)),  # weight (resident)
            pl.BlockSpec((1, OUT_PAD), lambda i: (0, 0)),     # bias   (resident)
        ],
        out_specs=pl.BlockSpec((tb, OUT_PAD), lambda i: (i, 0)),
        compiler_params=pltpu.CompilerParams(
            dimension_semantics=("parallel",)),
    )(x, w_pad, b_pad)

    # Drop the zero-padded lanes; under jit this slice fuses into the copy-out.
    return out_padded[:, :OUT_F]


if __name__ == "__main__":
    key = jax.random.PRNGKey(0)
    k_x, k_w, k_b = jax.random.split(key, 3)

    B = 8

    # Deterministic parameter init (mimics nn.Linear's U(-1/sqrt(in), 1/sqrt(in)))
    bound = 1.0 / jnp.sqrt(jnp.float32(IN_F))
    weight = jax.random.uniform(k_w, (OUT_F, IN_F), jnp.float32, -bound, bound)
    bias = jax.random.uniform(k_b, (OUT_F,), jnp.float32, -bound, bound)

    x = jax.random.normal(k_x, (B, IN_F), jnp.float32)

    # Parameter prep done once, outside the forward path.
    w_pad, b_pad = prepare_params(weight, bias)

    out = generator_forward(x, w_pad, b_pad)
    out = jax.block_until_ready(out)

    # Pure-JAX reference check
    ref = jax.nn.sigmoid(x @ weight.T + bias)
    assert out.shape == (B, OUT_F)
    assert jnp.allclose(out, ref, atol=1e-5, rtol=1e-5)

    print("KERNEL_OK")
</pallas_src>

<mosaic_0001>
module attributes {stable_mosaic.version = 11 : i64} {
  func.func @generator_kernel(%arg0: i32, %arg1: memref<8x7xf32, #tpu.memory_space<vmem>>, %arg2: memref<7x128xf32, #tpu.memory_space<vmem>>, %arg3: memref<1x128xf32, #tpu.memory_space<vmem>>, %arg4: memref<8x128xf32, #tpu.memory_space<vmem>>) attributes {dimension_semantics = [#tpu.dimension_semantics<parallel>], iteration_bounds = array<i64: 1>, scalar_prefetch = 0 : i64, scratch_operands = 0 : i64, tpu.core_type = #tpu.core_type<tc>, window_params = [{transform_indices = @transform_0, window_bounds = array<i64: 8, 7>}, {pipeline_mode = #tpu.pipeline_mode<synchronous>, transform_indices = @transform_1, window_bounds = array<i64: 7, 128>}, {pipeline_mode = #tpu.pipeline_mode<synchronous>, transform_indices = @transform_2, window_bounds = array<i64: 1, 128>}, {transform_indices = @transform_3, window_bounds = array<i64: 8, 128>}]} {
    %c0 = arith.constant 0 : index
    %c0_0 = arith.constant 0 : index
    %0 = vector.load %arg1[%c0, %c0_0] : memref<8x7xf32, #tpu.memory_space<vmem>>, vector<8x7xf32>
    %c0_1 = arith.constant 0 : index
    %c0_2 = arith.constant 0 : index
    %1 = vector.load %arg2[%c0_1, %c0_2] : memref<7x128xf32, #tpu.memory_space<vmem>>, vector<7x128xf32>
    %cst = arith.constant dense<0.000000e+00> : vector<8x128xf32>
    %2 = tpu.matmul %0, %1, %cst {dimension_numbers = #tpu.dot_dimension_numbers<[1], [0], [0], [1], [0, 0, 1, 1], [], []>} : vector<8x7xf32>, vector<7x128xf32>, vector<8x128xf32> -> vector<8x128xf32>
    %c0_3 = arith.constant 0 : index
    %c0_4 = arith.constant 0 : index
    %3 = vector.load %arg3[%c0_3, %c0_4] : memref<1x128xf32, #tpu.memory_space<vmem>>, vector<1x128xf32>
    %4 = vector.broadcast %3 : vector<1x128xf32> to vector<8x128xf32>
    %5 = arith.addf %2, %4 : vector<8x128xf32>
    %6 = arith.negf %5 : vector<8x128xf32>
    %7 = math.exp %6 : vector<8x128xf32>
    %cst_5 = arith.constant 1.000000e+00 : f32
    %8 = vector.broadcast %cst_5 : f32 to vector<8x128xf32>
    %9 = arith.addf %8, %7 : vector<8x128xf32>
    %10 = arith.divf %8, %9 : vector<8x128xf32>
    %c0_6 = arith.constant 0 : index
    %c0_7 = arith.constant 0 : index
    %11 = vector.load %arg4[%c0_6, %c0_7] : memref<8x128xf32, #tpu.memory_space<vmem>>, vector<8x128xf32>
    tpu.vector_store %arg4[%c0_6, %c0_7], %10 {strides = array<i32>} : memref<8x128xf32, #tpu.memory_space<vmem>>, vector<8x128xf32>,
    return
  }
  func.func @transform_0(%arg0: i32) -> (i32, i32) {
    %c0_i32 = arith.constant 0 : i32
    %c0_i32_0 = arith.constant 0 : i32
    return %arg0, %c0_i32 : i32, i32
  }
  func.func @transform_1(%arg0: i32) -> (i32, i32) {
    %c0_i32 = arith.constant 0 : i32
    %c0_i32_0 = arith.constant 0 : i32
    %c0_i32_1 = arith.constant 0 : i32
    return %c0_i32, %c0_i32_0 : i32, i32
  }
  func.func @transform_2(%arg0: i32) -> (i32, i32) {
    %c0_i32 = arith.constant 0 : i32
    %c0_i32_0 = arith.constant 0 : i32
    %c0_i32_1 = arith.constant 0 : i32
    return %c0_i32, %c0_i32_0 : i32, i32
  }
  func.func @transform_3(%arg0: i32) -> (i32, i32) {
    %c0_i32 = arith.constant 0 : i32
    %c0_i32_0 = arith.constant 0 : i32
    return %arg0, %c0_i32 : i32, i32
  }
}

</mosaic_0001>

<llo_original>
// kernel: generator_forward.1
$region0: #{generator_forward.1}
  #allocation0 [shape = 'u32[]', space=smem, size = 0x4, offset = 0x4, fixed_abs, tag = 'smem constant byte address 0x4 - core index']
  #allocation1 [shape = 'u32[144,128]{1,0:T(1,128)}', space=vmem, size = 0x12000, scoped, tag = 'internal scratch']
  %s0 = inlined_call_operand.hbm [shape: f32[8,7], index: 0, kind: input, shape index: {}]
  %s1 = inlined_call_operand.hbm [shape: f32[7,128], index: 1, kind: input, shape index: {}]
  %s2 = inlined_call_operand.vmem [shape: f32[1,128], index: 2, kind: input, shape index: {}]
  %s3 = inlined_call_operand.hbm [shape: f32[8,128], index: 3, kind: output, shape index: {}]
  %s4 = sld [smem:[#allocation0]]
  $region30: #{generator_forward.1} parent=0
    _
  %s6 = ssub.s32 1, %s4
  %s7 = scalar_select 0, %s6, %s4
  $region1: #{generator_forward.1} parent=0
    #allocation2 [shape = 'u8[4096]{0}', space=vmem, size = 0x1000, scoped, tag = 'input window, operand 0, single buffered']
    #allocation3 [shape = 's32[1]{0}', space=sflag, size = 0x4, scoped, tag = 'scoped memory for generator_forward.1']
    #allocation4 [shape = 's32[1]{0}', space=sflag, size = 0x4, scoped, tag = 'scoped memory for generator_forward.1']
    #allocation5 [shape = 'u8[4096]{0}', space=vmem, size = 0x1000, scoped, tag = 'input window, operand 1, single buffered']
    #allocation6 [shape = 's32[1]{0}', space=sflag, size = 0x4, scoped, tag = 'scoped memory for generator_forward.1']
    #allocation7 [shape = 'u8[4096]{0}', space=vmem, size = 0x1000, scoped, tag = 'output window, operand 0, single buffered']
    %8 = vsyncpa [#allocation3], 0
    %9 = vsyncpa [#allocation6], 0
    %10 = vsyncpa [#allocation4], 0
    // Predicated region
    $region2: #{generator_forward.1} parent=1 // pred_check
      _
    $region3: #{generator_forward.1} parent=1 // pred_check_branch
      %12 = sbr.rel (0) target = $region5
    $region4: #{generator_forward.1} parent=1 // pred_region
      %s14 = ssub.s32 128, 128
      %15 = vsyncadd [#allocation3], %s14
      %s17 = sshll.u32 [#allocation2], 4
      %s18 = int_to_ptr.vmem [resolvable:$true] %s17
      %20 = dma.hbm_to_vmem [thread:$0]  %s0, 128, %s18, [#allocation3]
    $region5: #{generator_forward.1} parent=1 // pred_fallthru
      _
    // Predicated region
    $region6: #{generator_forward.1} parent=1 // pred_check
      _
    $region7: #{generator_forward.1} parent=1 // pred_check_branch
      %22 = sbr.rel (0) target = $region9
    $region8: #{generator_forward.1} parent=1 // pred_region
      %s24 = ssub.s32 128, 128
      %25 = vsyncadd [#allocation6], %s24
      %s27 = sshll.u32 [#allocation5], 4
      %s28 = int_to_ptr.vmem [resolvable:$true] %s27
      %30 = dma.hbm_to_vmem [thread:$0]  %s1, 128, %s28, [#allocation6]
    $region9: #{generator_forward.1} parent=1 // pred_fallthru
      _
    // Predicated region
    $region10: #{generator_forward.1} parent=1 // pred_check
      _
    $region11: #{generator_forward.1} parent=1 // pred_check_branch
      %32 = sbr.rel (0) target = $region13
    $region12: #{generator_forward.1} parent=1 // pred_region
      _
    $region13: #{generator_forward.1} parent=1 // pred_fallthru
      _
    // Predicated region
    $region14: #{generator_forward.1} parent=1 // pred_check
      _
    $region15: #{generator_forward.1} parent=1 // pred_check_branch
      %34 = sbr.rel (0) target = $region17
    $region16: #{generator_forward.1} parent=1 // pred_region
      %35 = dma.done [#allocation3], 128
    $region17: #{generator_forward.1} parent=1 // pred_fallthru
      _
    // Predicated region
    $region18: #{generator_forward.1} parent=1 // pred_check
      _
    $region19: #{generator_forward.1} parent=1 // pred_check_branch
      %37 = sbr.rel (0) target = $region21
    $region20: #{generator_forward.1} parent=1 // pred_region
      %38 = dma.done [#allocation6], 128
    $region21: #{generator_forward.1} parent=1 // pred_fallthru
      _
    %v39 = vld [vmem:[#allocation2] sm:$0xff]
    %v40 = vld [vmem:[#allocation5] sm:$0x7f]
    %v41 = vld [vmem:[%s2] sm:$0x1]
    %v43 = vlaneseq
    %v44 = vshrl.u32 %v43, 7
    %v45 = vsub.s32 0, %v44
    %v46 = vrot.slane %v41, %v45
    %vm48 = vcmask 56320
    %v50 = vsel %vm48, %v39, 0
    %vm52 = vcmask 1046528
    %v54 = vsel %vm52, %v40, 0
    %56 = vmatprep.subr.mxu0 0.0
    %57 = vmatpush1.msra.mxu0 %v54
    %58 = vmatprep.subr.mxu0 0.0
    %59 = vmatpush1.msra.mxu0 0.0
    %60 = vmatprep.subr.mxu0 0.0
    %61 = vmatpush1.msra.mxu0 0.0
    %62 = vmatprep.subr.mxu0 0.0
    %63 = vmatpush1.msra.mxu0 0.0
    %64 = vmatprep.subr.mxu0 0.0
    %65 = vmatpush1.msra.mxu0 0.0
    %66 = vmatprep.subr.mxu0 0.0
    %67 = vmatpush1.msra.mxu0 0.0
    %68 = vmatprep.subr.mxu0 0.0
    %69 = vmatpush1.msra.mxu0 0.0
    %70 = vmatprep.subr.mxu0 0.0
    %71 = vmatpush1.msra.mxu0 0.0
    %72 = vmatprep.subr.mxu0 0.0
    %73 = vmatpush1.msra.mxu0 0.0
    %74 = vmatprep.subr.mxu0 0.0
    %75 = vmatpush1.msra.mxu0 0.0
    %76 = vmatprep.subr.mxu0 0.0
    %77 = vmatpush1.msra.mxu0 0.0
    %78 = vmatprep.subr.mxu0 0.0
    %79 = vmatpush1.msra.mxu0 0.0
    %80 = vmatprep.subr.mxu0 0.0
    %81 = vmatpush1.msra.mxu0 0.0
    %82 = vmatprep.subr.mxu0 0.0
    %83 = vmatpush1.msra.mxu0 0.0
    %84 = vmatprep.subr.mxu0 0.0
    %85 = vmatpush1.msra.mxu0 0.0
    %86 = vmatprep.subr.mxu0 0.0
    %87 = vmatpush1.msra.mxu0 0.0
    %88 = vmatprep.subr.mxu0 0.0
    %89 = vmatpush1.msra.mxu0 0.0
    %90 = vmatprep.subr.mxu0 0.0
    %91 = vmatpush1.msra.mxu0 0.0
    %92 = vmatprep.subr.mxu0 0.0
    %93 = vmatpush1.msra.mxu0 0.0
    %94 = vmatprep.subr.mxu0 0.0
    %95 = vmatpush1.msra.mxu0 0.0
    %96 = vmatprep.subr.mxu0 0.0
    %97 = vmatpush1.msra.mxu0 0.0
    %98 = vmatprep.subr.mxu0 0.0
    %99 = vmatpush1.msra.mxu0 0.0
    %100 = vmatprep.subr.mxu0 0.0
    %101 = vmatpush1.msra.mxu0 0.0
    %102 = vmatprep.subr.mxu0 0.0
    %103 = vmatpush1.msra.mxu0 0.0
    %104 = vmatprep.subr.mxu0 0.0
    %105 = vmatpush1.msra.mxu0 0.0
    %106 = vmatprep.subr.mxu0 0.0
    %107 = vmatpush1.msra.mxu0 0.0
    %108 = vmatprep.subr.mxu0 0.0
    %109 = vmatpush1.msra.mxu0 0.0
    %110 = vmatprep.subr.mxu0 0.0
    %111 = vmatpush1.msra.mxu0 0.0
    %112 = vmatprep.subr.mxu0 0.0
    %113 = vmatpush1.msra.mxu0 0.0
    %114 = vmatprep.subr.mxu0 0.0
    %115 = vmatpush1.msra.mxu0 0.0
    %116 = vmatprep.subr.mxu0 0.0
    %117 = vmatpush1.msra.mxu0 0.0
    %118 = vmatprep.subr.mxu0 0.0
    %119 = vmatpush1.msra.mxu0 0.0
    %120 = vmatprep.mubr.f32.mxu0 0.0
    %121 = vmatmul.mubr.f32.gmra.mrb[0].mxu0 %v50
    %v122 = vpop.f32.mrb[0].mxu0
    %v123 = vadd.f32 %v46, %v122
    %v124 = vpop.f32.mrb[0].mxu0
    %125 = vdwg.mxu0
    %v126 = vxor.u32 %v123, 2147483648
    %v127 = vmul.f32 %v126, 1.442695
    %v128 = vpow.pop %v127
    %v129 = vadd.f32 %v128, 1.0
    %v130 = vrcp.pop %v129
    %v131 = vmul.f32 1.0, %v130
    %132 = vst [vmem:[#allocation7] sm:$0xff] %v131
    // Predicated region
    $region22: #{generator_forward.1} parent=1 // pred_check
      _
    $region23: #{generator_forward.1} parent=1 // pred_check_branch
      %134 = sbr.rel (0) target = $region25
    $region24: #{generator_forward.1} parent=1 // pred_region
      %s136 = ssub.s32 128, 128
      %137 = vsyncadd [#allocation4], %s136
      %s139 = sshll.u32 [#allocation7], 4
      %s140 = int_to_ptr.vmem [resolvable:$true] %s139
      %142 = dma.vmem_to_hbm [thread:$0]  %s140, 128, %s3, [#allocation4]
    $region25: #{generator_forward.1} parent=1 // pred_fallthru
      _
    // Predicated region
    $region26: #{generator_forward.1} parent=1 // pred_check
      _
    $region27: #{generator_forward.1} parent=1 // pred_check_branch
      %144 = sbr.rel (0) target = $region29
    $region28: #{generator_forward.1} parent=1 // pred_region
      %145 = dma.done [#allocation4], 128
    $region29: #{generator_forward.1} parent=1 // pred_fallthru
      _
    %146 = vsyncpa [#allocation3], 1
    %147 = vsyncpa [#allocation6], 1
    %148 = vsyncpa [#allocation4], 1

</llo_original>
